<compile_context>
chip_gen: v5e
topology: v5e:2x2
jax: 0.10.0
libtpu: 0.0.40
codegen_flags: <defaults>
</compile_context>

<pallas_src>
import jax
import jax.numpy as jnp
from jax.experimental import pallas as pl
from jax.experimental.pallas import tpu as pltpu

_LANES = 128
_SUBLANES = 8
_DEFAULT_BLOCK_ROWS = 1024          # (1024, 128) fp32 tile = 512 KiB
_SMALL_MAX_ELEMS = 512 * 1024       # <= 2 MiB fp32 -> single-block fast path
_VMEM_LIMIT = 32 * 1024 * 1024


def _softmax_whole_kernel(x_ref, o_ref):
    """Fast path: whole (padded) tensor resident in VMEM, global stable softmax."""
    x = x_ref[...].astype(jnp.float32)             # (rows, 128), lane/sublane dense
    c = jnp.max(x, keepdims=True)                  # (1, 1) global max
    e = jnp.exp(x - c)                             # -inf padding -> exp == 0
    inv = 1.0 / jnp.sum(e, keepdims=True)          # exact single (1,1) divide
    o_ref[...] = (e * inv).astype(o_ref.dtype)


def _reduce_kernel(x_ref, m_out, l_out, m_acc, l_acc):
    """Pass 1: online (max, rescaled sum) over tiles, accumulated in VMEM scratch.

    Scratch persists across the sequential grid; outputs are refreshed from the
    scratch every step so the final write-back holds the full reduction.
    """
    i = pl.program_id(0)

    @pl.when(i == 0)
    def _init():
        m_acc[...] = jnp.full(m_acc.shape, -jnp.inf, dtype=jnp.float32)
        l_acc[...] = jnp.zeros(l_acc.shape, dtype=jnp.float32)

    x = x_ref[...].astype(jnp.float32)             # (block_rows, 128)
    m_old = m_acc[...]                             # (1, 1)
    m_new = jnp.maximum(m_old, jnp.max(x, keepdims=True))
    p_sum = jnp.sum(jnp.exp(x - m_new), keepdims=True)
    l_acc[...] = l_acc[...] * jnp.exp(m_old - m_new) + p_sum
    m_acc[...] = m_new

    m_out[...] = m_acc[...]
    l_out[...] = l_acc[...]


def _normalize_kernel(m_ref, l_ref, x_ref, o_ref):
    """Pass 2: out = exp(x - max) * (1 / sum). Embarrassingly parallel."""
    x = x_ref[...].astype(jnp.float32)
    inv = 1.0 / l_ref[...]                         # exact (1,1) divide
    o_ref[...] = (jnp.exp(x - m_ref[...]) * inv).astype(o_ref.dtype)


def _round_up(x, m):
    return (x + m - 1) // m * m


def _pad_to_2d(data, row_multiple):
    """Pad 1-D `data` with -inf and reshape to a lane/sublane-dense 2-D layout."""
    n = data.shape[0]
    padded_n = _round_up(n, row_multiple * _LANES)
    x = jnp.pad(data, (0, padded_n - n), constant_values=-jnp.inf)
    return x.reshape(padded_n // _LANES, _LANES)


def softmax_stable(data, *, block_rows=_DEFAULT_BLOCK_ROWS, force_tiled=False):
    """Stable softmax over the whole 1-D tensor, like the PyTorch module."""
    assert data.ndim == 1, "softmax_stable expects a 1-D tensor like the PyTorch module"
    n = data.shape[0]
    assert n >= 1

    use_tiled = force_tiled or (n > _SMALL_MAX_ELEMS)

    if not use_tiled:
        # ---- Fast path: whole padded tensor as one lane/sublane-dense block. ----
        x2d = _pad_to_2d(data, _SUBLANES)
        rows = x2d.shape[0]
        out2d = pl.pallas_call(
            _softmax_whole_kernel,
            out_shape=jax.ShapeDtypeStruct((rows, _LANES), data.dtype),
            compiler_params=pltpu.CompilerParams(vmem_limit_bytes=_VMEM_LIMIT),
        )(x2d)
        return out2d.reshape(-1)[:n]

    # ---- Tiled, pipelined two-pass path for large N. ----
    x2d = _pad_to_2d(data, block_rows)
    rows = x2d.shape[0]
    num_tiles = rows // block_rows

    tile_spec = pl.BlockSpec((block_rows, _LANES), lambda i: (i, 0))
    stat_spec = pl.BlockSpec((1, 1), lambda i: (0, 0))
    stat_shape = jax.ShapeDtypeStruct((1, 1), jnp.float32)

    # Pass 1: global max & rescaled sum (sequential online reduction in scratch).
    m, l = pl.pallas_call(
        _reduce_kernel,
        out_shape=(stat_shape, stat_shape),
        grid=(num_tiles,),
        in_specs=[tile_spec],
        out_specs=(stat_spec, stat_spec),
        scratch_shapes=[pltpu.VMEM((1, 1), jnp.float32),
                        pltpu.VMEM((1, 1), jnp.float32)],
        compiler_params=pltpu.CompilerParams(
            dimension_semantics=("arbitrary",),
            vmem_limit_bytes=_VMEM_LIMIT),
    )(x2d)

    # Pass 2: normalize; "parallel" axis lets v7x shard tiles across both TCs.
    out2d = pl.pallas_call(
        _normalize_kernel,
        out_shape=jax.ShapeDtypeStruct((rows, _LANES), data.dtype),
        grid=(num_tiles,),
        in_specs=[stat_spec, stat_spec, tile_spec],
        out_specs=tile_spec,
        compiler_params=pltpu.CompilerParams(
            dimension_semantics=("parallel",),
            vmem_limit_bytes=_VMEM_LIMIT),
    )(m, l, x2d)

    return out2d.reshape(-1)[:n]


def _reference(x):
    c = jnp.max(x)
    e = jnp.exp(x - c)
    return e / jnp.sum(e)


if __name__ == "__main__":
    key = jax.random.PRNGKey(0)
    k_small, k_big = jax.random.split(key)

    # 0) The exact example from the module spec: data = [1, 2, 3].
    x_spec = jnp.array([1.0, 2.0, 3.0], dtype=jnp.float32)
    y_spec = softmax_stable(x_spec)
    jax.block_until_ready(y_spec)
    assert y_spec.shape == x_spec.shape
    assert jnp.allclose(y_spec, _reference(x_spec), atol=1e-5, rtol=1e-5)
    assert jnp.allclose(jnp.sum(y_spec), 1.0, atol=1e-4)

    # 1) Small 1-D input consistent with the module (seq=8) -> fast path.
    x_small = jax.random.normal(k_small, (8,), dtype=jnp.float32)
    y_small = softmax_stable(x_small)
    jax.block_until_ready(y_small)
    ref_small = _reference(x_small)
    assert y_small.shape == x_small.shape
    assert jnp.allclose(y_small, ref_small, atol=1e-5, rtol=1e-5), (y_small, ref_small)
    assert jnp.allclose(jnp.sum(y_small), 1.0, atol=1e-4)

    # 2) Exercise the tiled two-pass path (small block_rows -> several grid
    #    steps, including -inf padding handling in the online reduction).
    x_big = jax.random.normal(k_big, (4099,), dtype=jnp.float32)
    y_big = softmax_stable(x_big, block_rows=8, force_tiled=True)
    jax.block_until_ready(y_big)
    ref_big = _reference(x_big)
    assert y_big.shape == x_big.shape
    assert jnp.allclose(y_big, ref_big, atol=1e-5, rtol=1e-3)
    assert jnp.allclose(jnp.sum(y_big), 1.0, atol=5e-4)

    print("KERNEL_OK")
</pallas_src>

<mosaic_0001>
module attributes {stable_mosaic.version = 11 : i64} {
  func.func @_softmax_whole_kernel(%arg0: memref<8x128xf32, #tpu.memory_space<vmem>>, %arg1: memref<8x128xf32, #tpu.memory_space<vmem>>) attributes {dimension_semantics = [], scalar_prefetch = 0 : i64, scratch_operands = 0 : i64, tpu.core_type = #tpu.core_type<tc>} {
    %c0 = arith.constant 0 : index
    %c0_0 = arith.constant 0 : index
    %0 = vector.load %arg0[%c0, %c0_0] : memref<8x128xf32, #tpu.memory_space<vmem>>, vector<8x128xf32>
    %1 = vector.shape_cast %0 : vector<8x128xf32> to vector<1x8x128xf32>
    %cst = arith.constant dense<0xFF800000> : vector<1xf32>
    %2 = vector.multi_reduction <maximumf>, %1, %cst [1, 2] : vector<1x8x128xf32> to vector<1xf32>
    %3 = vector.shape_cast %2 : vector<1xf32> to vector<1x1x1xf32>
    %4 = vector.extract %3[0, 0, 0] : f32 from vector<1x1x1xf32>
    %5 = vector.broadcast %4 : f32 to vector<1x1xf32>
    %6 = vector.broadcast %5 : vector<1x1xf32> to vector<8x128xf32>
    %7 = arith.subf %0, %6 : vector<8x128xf32>
    %8 = math.exp %7 : vector<8x128xf32>
    %9 = vector.shape_cast %8 : vector<8x128xf32> to vector<1x8x128xf32>
    %cst_1 = arith.constant dense<0.000000e+00> : vector<1xf32>
    %10 = vector.multi_reduction <add>, %9, %cst_1 [1, 2] : vector<1x8x128xf32> to vector<1xf32>
    %11 = vector.shape_cast %10 : vector<1xf32> to vector<1x1x1xf32>
    %12 = vector.extract %11[0, 0, 0] : f32 from vector<1x1x1xf32>
    %13 = vector.broadcast %12 : f32 to vector<1x1xf32>
    %cst_2 = arith.constant 1.000000e+00 : f32
    %14 = vector.broadcast %cst_2 : f32 to vector<1x1xf32>
    %15 = arith.divf %14, %13 : vector<1x1xf32>
    %16 = vector.broadcast %15 : vector<1x1xf32> to vector<8x128xf32>
    %17 = arith.mulf %8, %16 : vector<8x128xf32>
    %c0_3 = arith.constant 0 : index
    %c0_4 = arith.constant 0 : index
    %18 = vector.load %arg1[%c0_3, %c0_4] : memref<8x128xf32, #tpu.memory_space<vmem>>, vector<8x128xf32>
    tpu.vector_store %arg1[%c0_3, %c0_4], %17 {strides = array<i32>} : memref<8x128xf32, #tpu.memory_space<vmem>>, vector<8x128xf32>,
    return
  }
}

</mosaic_0001>

<llo_original>
// kernel: tpu_custom_call.1
$region0: #{tpu_custom_call.1}
  #allocation0 [shape = 'u32[]', space=smem, size = 0x4, offset = 0x4, fixed_abs, tag = 'smem constant byte address 0x4 - core index']
  #allocation1 [shape = 'u32[72,128]{1,0:T(1,128)}', space=vmem, size = 0x9000, scoped, tag = 'internal scratch']
  %s0 = inlined_call_operand.hbm [shape: f32[8,128], index: 0, kind: input, shape index: {}]
  %s1 = inlined_call_operand.hbm [shape: f32[8,128], index: 1, kind: output, shape index: {}]
  %s2 = sld [smem:[#allocation0]]
  $region18: #{tpu_custom_call.1} parent=0
    _
  %s4 = ssub.s32 1, %s2
  %s5 = scalar_select 0, %s4, %s2
  $region1: #{tpu_custom_call.1} parent=0
    #allocation2 [shape = 'u8[4096]{0}', space=vmem, size = 0x1000, scoped, tag = 'input window, operand 0, single buffered']
    #allocation3 [shape = 's32[1]{0}', space=sflag, size = 0x4, scoped, tag = 'scoped memory for tpu_custom_call.1']
    #allocation4 [shape = 's32[1]{0}', space=sflag, size = 0x4, scoped, tag = 'scoped memory for tpu_custom_call.1']
    #allocation5 [shape = 'u8[4096]{0}', space=vmem, size = 0x1000, scoped, tag = 'output window, operand 0, single buffered']
    %6 = vsyncpa [#allocation3], 0
    %7 = vsyncpa [#allocation4], 0
    // Predicated region
    $region2: #{tpu_custom_call.1} parent=1 // pred_check
      _
    $region3: #{tpu_custom_call.1} parent=1 // pred_check_branch
      %9 = sbr.rel (0) target = $region5
    $region4: #{tpu_custom_call.1} parent=1 // pred_region
      %11 = vsyncadd [#allocation3], 0
      %s13 = sshll.u32 %s0, 4
      %s14 = int_to_ptr.hbm [resolvable:$true] %s13
      %s15 = sshll.u32 [#allocation2], 4
      %s16 = int_to_ptr.vmem [resolvable:$true] %s15
      %18 = dma.hbm_to_vmem [thread:$0]  %s14, 128, %s16, [#allocation3]
    $region5: #{tpu_custom_call.1} parent=1 // pred_fallthru
      _
    // Predicated region
    $region6: #{tpu_custom_call.1} parent=1 // pred_check
      _
    $region7: #{tpu_custom_call.1} parent=1 // pred_check_branch
      %20 = sbr.rel (0) target = $region9
    $region8: #{tpu_custom_call.1} parent=1 // pred_region
      %22 = dma.done [#allocation3], 128
    $region9: #{tpu_custom_call.1} parent=1 // pred_fallthru
      _
    %v23 = vld [vmem:[#allocation2] sm:$0xff]
    %24 = vmax.xlane.f32.xlu0 %v23
    %v25 = vpop.xlane.xlu0 %24
    %v26 = vrot.slane %v25, 4
    %v27 = vmax.f32 %v25, %v26
    %v28 = vrot.slane %v27, 2
    %v29 = vmax.f32 %v27, %v28
    %v30 = vrot.slane %v29, 1
    %v31 = vmax.f32 %v29, %v30
    %s32 = vtos %v31
    %v33 = vstv %s32
    %v34 = vsub.f32 %v23, %v33
    %v35 = vmul.f32 %v34, 1.442695
    %v36 = vpow.pop %v35
    %37 = vadd.xlane.f32.xlu0 %v36
    %v38 = vpop.xlane.xlu0 %37
    %v39 = vrot.slane %v38, 4
    %v40 = vadd.f32 %v38, %v39
    %v41 = vrot.slane %v40, 2
    %v42 = vadd.f32 %v40, %v41
    %v43 = vrot.slane %v42, 1
    %v44 = vadd.f32 %v42, %v43
    %s45 = vtos %v44
    %v46 = vstv %s45
    %v47 = vrcp.pop %v46
    %v48 = vmul.f32 %v46, %v47
    %v49 = vsub.f32 1.0, %v48
    %v50 = vmul.f32 %v47, %v49
    %v51 = vadd.f32 %v47, %v50
    %vm52 = vweird.f32 %v46
    %vm53 = vweird.f32 %v47
    %vm54 = vmor %vm52, %vm53
    %v55 = vsel %vm54, %v47, %v51
    %v56 = vand.u32 2147483647, %v46
    %vm57 = vcmp.eq.f32.partialorder %v56, 8.507059e+37
    %v58 = vand.u32 %v46, 2147483648
    %v59 = vor.u32 1.1754944e-38, %v58
    %v60 = vsel %vm57, %v59, %v55
    %v61 = vmul.f32 1.0, %v60
    %v62 = vmul.f32 %v36, %v61
    %63 = vst [vmem:[#allocation5] sm:$0xff] %v62
    // Predicated region
    $region10: #{tpu_custom_call.1} parent=1 // pred_check
      _
    $region11: #{tpu_custom_call.1} parent=1 // pred_check_branch
      %65 = sbr.rel (0) target = $region13
    $region12: #{tpu_custom_call.1} parent=1 // pred_region
      %67 = vsyncadd [#allocation4], 0
      %s69 = sshll.u32 [#allocation5], 4
      %s70 = int_to_ptr.vmem [resolvable:$true] %s69
      %s71 = sshll.u32 %s1, 4
      %s72 = int_to_ptr.hbm [resolvable:$true] %s71
      %74 = dma.vmem_to_hbm [thread:$0]  %s70, 128, %s72, [#allocation4]
    $region13: #{tpu_custom_call.1} parent=1 // pred_fallthru
      _
    // Predicated region
    $region14: #{tpu_custom_call.1} parent=1 // pred_check
      _
    $region15: #{tpu_custom_call.1} parent=1 // pred_check_branch
      %76 = sbr.rel (0) target = $region17
    $region16: #{tpu_custom_call.1} parent=1 // pred_region
      %78 = dma.done [#allocation4], 128
    $region17: #{tpu_custom_call.1} parent=1 // pred_fallthru
      _
    %79 = vsyncpa [#allocation3], 1
    %80 = vsyncpa [#allocation4], 1

</llo_original>
